<compile_context>
chip_gen: v6e
topology: v6e:2x2x1
jax: 0.10.0
libtpu: 0.0.40
codegen_flags: <defaults>
</compile_context>

<pallas_src>
import math

import jax
import jax.numpy as jnp
from jax.experimental import pallas as pl
from jax.experimental.pallas import tpu as pltpu

D_MODEL = 128          # d_model (kept small & lane-aligned)
ELEM_VOCAB = 100
PROP_VOCAB = 50
MAX_POSITION = 1000
LN_EPS = 1e-5
VMEM_LIMIT = 32 * 1024 * 1024   # explicit scoped-VMEM headroom (safe on v5e/v6e/v7x)

_NUM_TC_CACHE = None


# ----------------------------------------------------------------------------- #
# Helpers
# ----------------------------------------------------------------------------- #
def _round_up(x, m):
    return ((x + m - 1) // m) * m


def _num_tensorcores():
    """2 on v7x (megacore sharding via 'parallel' axes), else 1. Best-effort probe."""
    global _NUM_TC_CACHE
    if _NUM_TC_CACHE is None:
        ntc = 1
        try:
            kind = jax.devices()[0].device_kind.lower()
            if "v7" in kind or kind.startswith("tpu7"):
                ntc = 2
        except Exception:
            ntc = 1
        _NUM_TC_CACHE = ntc
    return _NUM_TC_CACHE


def _choose_tm(m, max_tm=1024):
    """Row tile for 2-D row-blocked kernels: 128-multiple, as big as possible on
    single-TC chips; split into >=2 steps on v7x when there is enough work."""
    tm = min(max_tm, _round_up(max(m, 8), 128))
    if _num_tensorcores() >= 2 and m > 256:
        tm = min(tm, _round_up(-(-m // 2), 128))   # ~2 steps -> both TensorCores busy
    return tm


def _choose_tb(b, s, target_rows=1024):
    """Batch tile for the (B, S, D) token kernel: ~target_rows rows per block."""
    tb = max(1, target_rows // max(s, 1))
    tb = min(tb, b)
    if _num_tensorcores() >= 2 and b > 1:
        tb = min(tb, -(-b // 2))                   # >=2 parallel steps on v7x
    return tb


def _layer_norm_f32(x, w, b):
    x = x.astype(jnp.float32)
    mu = jnp.mean(x, axis=-1, keepdims=True)
    var = jnp.mean((x - mu) ** 2, axis=-1, keepdims=True)
    return (x - mu) * jax.lax.rsqrt(var + LN_EPS) * w + b


# ----------------------------------------------------------------------------- #
# Kernel 1: layout path (fully folded)
#   out = LayerNorm([geo_pad8 | discrete | class] @ W_layout + b_layout)
# ----------------------------------------------------------------------------- #
def _layout_kernel(act_ref, w_ref, b_ref, lnw_ref, lnb_ref, out_ref):
    fused = jnp.dot(act_ref[...], w_ref[...],
                    preferred_element_type=jnp.float32) + b_ref[...]
    out_ref[...] = _layer_norm_f32(fused, lnw_ref[...], lnb_ref[...])


def layout_fused(act, p):
    M, K = act.shape                               # K = 8 + 2*D = 264
    D = p['W_layout'].shape[1]
    tm = _choose_tm(M)
    grid = (pl.cdiv(M, tm),)                       # ragged tail -> Pallas partial block
    full = lambda a: pl.BlockSpec(a.shape, lambda i: (0,) * a.ndim)
    out = pl.pallas_call(
        _layout_kernel,
        out_shape=jax.ShapeDtypeStruct((M, D), jnp.float32),
        grid=grid,
        in_specs=[pl.BlockSpec((tm, K), lambda i: (i, 0)),
                  full(p['W_layout']), full(p['b_layout']),
                  full(p['ln_w']), full(p['ln_b'])],
        out_specs=pl.BlockSpec((tm, D), lambda i: (i, 0)),
        compiler_params=pltpu.CompilerParams(
            dimension_semantics=("parallel",),
            vmem_limit_bytes=VMEM_LIMIT),
    )(act, p['W_layout'], p['b_layout'], p['ln_w'], p['ln_b'])
    return out


# ----------------------------------------------------------------------------- #
# Kernel 2: token path  out = LayerNorm(token_emb + pos_emb)
#   pos is either a shared (1,S,D) block (reused across all batch tiles) or a
#   gathered (B,S,D) array (when sequence_positions is given).
# ----------------------------------------------------------------------------- #
def _token_kernel(tok_ref, pos_ref, lnw_ref, lnb_ref, out_ref):
    x = tok_ref[...].astype(jnp.float32) + pos_ref[...].astype(jnp.float32)
    out_ref[...] = _layer_norm_f32(x, lnw_ref[...], lnb_ref[...])


def token_fused(tok, pos, ln_w, ln_b, pos_shared):
    B, S, D = tok.shape
    tb = _choose_tb(B, S)
    grid = (pl.cdiv(B, tb),)
    full = lambda a: pl.BlockSpec(a.shape, lambda i: (0,) * a.ndim)
    if pos_shared:
        pos_spec = pl.BlockSpec((1, S, D), lambda i: (0, 0, 0))
    else:
        pos_spec = pl.BlockSpec((tb, S, D), lambda i: (i, 0, 0))
    out = pl.pallas_call(
        _token_kernel,
        out_shape=jax.ShapeDtypeStruct((B, S, D), jnp.float32),
        grid=grid,
        in_specs=[pl.BlockSpec((tb, S, D), lambda i: (i, 0, 0)),
                  pos_spec, full(ln_w), full(ln_b)],
        out_specs=pl.BlockSpec((tb, S, D), lambda i: (i, 0, 0)),
        compiler_params=pltpu.CompilerParams(
            dimension_semantics=("parallel",),
            vmem_limit_bytes=VMEM_LIMIT),
    )(tok, pos, ln_w, ln_b)
    return out


# ----------------------------------------------------------------------------- #
# Kernel 3: timestep path
#   t   = SiLU(sin_emb @ W1 + b1) @ W2 + b2
#   mod = t @ Wm + bm          (single K=128,N=256 matmul; scale/shift split outside)
# ----------------------------------------------------------------------------- #
def _timestep_kernel(sin_ref, w1_ref, b1_ref, w2_ref, b2_ref, wm_ref, bm_ref,
                     temb_ref, mod_ref):
    h = jnp.dot(sin_ref[...], w1_ref[...],
                preferred_element_type=jnp.float32) + b1_ref[...]
    h = h * jax.nn.sigmoid(h)                       # SiLU in f32
    t = jnp.dot(h.astype(jnp.bfloat16), w2_ref[...],
                preferred_element_type=jnp.float32) + b2_ref[...]
    temb_ref[...] = t
    mod_ref[...] = jnp.dot(t.astype(jnp.bfloat16), wm_ref[...],
                           preferred_element_type=jnp.float32) + bm_ref[...]


def timestep_fused(sin_emb_bf16, p):
    B, D = sin_emb_bf16.shape
    full = lambda a: pl.BlockSpec(a.shape, lambda i: (0,) * a.ndim)
    return pl.pallas_call(
        _timestep_kernel,
        out_shape=(jax.ShapeDtypeStruct((B, D), jnp.float32),
                   jax.ShapeDtypeStruct((B, 2 * D), jnp.float32)),
        grid=(1,),
        in_specs=[full(sin_emb_bf16),
                  full(p['W1_b']), full(p['b1']),
                  full(p['W2_b']), full(p['b2']),
                  full(p['Wm_b']), full(p['bm'])],
        out_specs=(pl.BlockSpec((B, D), lambda i: (0, 0)),
                   pl.BlockSpec((B, 2 * D), lambda i: (0, 0))),
        compiler_params=pltpu.CompilerParams(vmem_limit_bytes=VMEM_LIMIT),
    )(sin_emb_bf16, p['W1_b'], p['b1'], p['W2_b'], p['b2'], p['Wm_b'], p['bm'])


# ----------------------------------------------------------------------------- #
# Plain-JAX glue: tables, sinusoids, gathers, parameter init, weight folding
# ----------------------------------------------------------------------------- #
def _positional_encoding(max_len, d_model):
    position = jnp.arange(max_len, dtype=jnp.float32)[:, None]
    div_term = jnp.exp(jnp.arange(0, d_model, 2, dtype=jnp.float32)
                       * (-math.log(10000.0) / d_model))
    pe = jnp.zeros((max_len, d_model), jnp.float32)
    pe = pe.at[:, 0::2].set(jnp.sin(position * div_term))
    pe = pe.at[:, 1::2].set(jnp.cos(position * div_term))
    return pe


def init_params(key, d=D_MODEL):
    ks = jax.random.split(key, 24)
    n = lambda k, s, scale=0.02: (jax.random.normal(k, s, jnp.float32) * scale)
    q = d // 4
    params = {
        # embedding tables (f32 here; cast to bf16 in fold_params)
        'tok_table':  n(ks[0],  (ELEM_VOCAB + PROP_VOCAB, d)),
        'elem_table': n(ks[1],  (ELEM_VOCAB, d // 2)),
        'prop_table': n(ks[2],  (PROP_VOCAB, d // 2)),
        'posx_table': n(ks[3],  (MAX_POSITION, q)),
        'posy_table': n(ks[4],  (MAX_POSITION, q)),
        'w_table':    n(ks[5],  (MAX_POSITION, q)),
        'h_table':    n(ks[6],  (MAX_POSITION, q)),
        # geometric_projection Linear(6, d)
        'Wgp': n(ks[7], (6, d)),          'bgp': n(ks[8], (1, d)),
        # geometric fusion_layer Linear(2d, d) split into [discrete | continuous]
        'Wfa': n(ks[9], (d, d)),          'Wfb': n(ks[10], (d, d)),
        'bf':  n(ks[11], (1, d)),
        # class_fusion Linear(d, d)
        'Wcf': n(ks[12], (d, d)),         'bcf': n(ks[13], (1, d)),
        # geometric_class_fusion Linear(2d, d) split into [geom | class]
        'Wg1': n(ks[14], (d, d)),         'Wg2': n(ks[15], (d, d)),
        'bg':  n(ks[16], (1, d)),
        # timestep MLP Linear(d, 4d) -> SiLU -> Linear(4d, d)
        'W1': n(ks[17], (d, 4 * d)),      'b1': n(ks[18], (1, 4 * d)),
        'W2': n(ks[19], (4 * d, d)),      'b2': n(ks[20], (1, d)),
        # timestep_modulation Linear(d, 2d)
        'Wm': n(ks[21], (d, 2 * d)),      'bm': n(ks[22], (1, 2 * d)),
        # LayerNorm (default torch init)
        'ln_w': jnp.ones((1, d), jnp.float32),
        'ln_b': jnp.zeros((1, d), jnp.float32),
        # fixed sinusoidal positional encoding buffer
        'pos_encoding': _positional_encoding(1000, d),
    }
    return params


def fold_params(params):
    """One-time algebraic folding of the layout linear chain into a single stacked
    (264, D) bf16 weight + f32 bias, merged modulation weight, bf16 table casts."""
    p = dict(params)
    Wg1, Wg2 = p['Wg1'], p['Wg2']
    W_A = p['Wgp'] @ p['Wfb'] @ Wg1                                  # (6, D)  geo (continuous)
    W_B = p['Wfa'] @ Wg1                                             # (D, D)  discrete
    W_C = p['Wcf'] @ Wg2                                             # (D, D)  class
    W_A = jnp.pad(W_A, ((0, 8 - W_A.shape[0]), (0, 0)))              # pad 6 -> 8 K rows
    p['W_layout'] = jnp.concatenate([W_A, W_B, W_C], axis=0).astype(jnp.bfloat16)  # (264, D)
    p['b_layout'] = (p['bgp'] @ p['Wfb'] @ Wg1 + p['bf'] @ Wg1
                     + p['bcf'] @ Wg2 + p['bg'])                     # (1, D) f32
    # timestep MLP + single merged modulation weight
    p['W1_b'] = p['W1'].astype(jnp.bfloat16)
    p['W2_b'] = p['W2'].astype(jnp.bfloat16)
    p['Wm_b'] = p['Wm'].astype(jnp.bfloat16)                         # (D, 2D)
    # bf16 embedding tables / pos encoding (DMA + MXU dtype); LN + biases stay f32
    for k in ('tok_table', 'elem_table', 'prop_table', 'posx_table', 'posy_table',
              'w_table', 'h_table', 'pos_encoding'):
        p[k] = p[k].astype(jnp.bfloat16)
    return p


def layout_embedding_forward(params, layout_tokens, geometric_features,
                             element_ids, property_ids, timesteps,
                             sequence_positions=None):
    d = D_MODEL
    out = {}

    # ---- token path --------------------------------------------------------
    B, S = layout_tokens.shape
    tok = params['tok_table'][layout_tokens]                      # [B,S,D] bf16
    if sequence_positions is not None:
        pos = params['pos_encoding'][sequence_positions]          # [B,S,D] bf16
        pos_shared = False
    else:
        pos = params['pos_encoding'][:S][None]                    # [1,S,D] bf16 (no broadcast copy)
        pos_shared = True
    out['token_embeddings'] = token_fused(tok, pos, params['ln_w'], params['ln_b'],
                                          pos_shared)

    # ---- layout (geometric + class) path -----------------------------------
    Bn, N = element_ids.shape
    gi = lambda c: jnp.clip(geometric_features[..., c].astype(jnp.int32),
                            0, MAX_POSITION - 1)
    geo8 = jnp.pad(geometric_features,
                   ((0, 0), (0, 0), (0, 2))).astype(jnp.bfloat16)  # [B,N,8]
    # Single (M, 264) bf16 activation: [geo_pad8 | posx|posy|w|h | elem|prop]
    act = jnp.concatenate(
        [geo8,
         params['posx_table'][gi(0)], params['posy_table'][gi(1)],
         params['w_table'][gi(2)],    params['h_table'][gi(3)],
         params['elem_table'][element_ids],
         params['prop_table'][property_ids]],
        axis=-1).reshape(Bn * N, 8 + 2 * d)
    layout_out = layout_fused(act, params)
    out['layout_embeddings'] = layout_out.reshape(Bn, N, d)

    # ---- timestep path ------------------------------------------------------
    half = d // 2
    freqs = jnp.exp(jnp.arange(half, dtype=jnp.float32)
                    * (-math.log(10000.0) / (half - 1)))
    arg = timesteps.astype(jnp.float32).reshape(-1, 1) * freqs[None, :]
    sin_emb = jnp.concatenate([jnp.sin(arg), jnp.cos(arg)], axis=-1)      # [B,D] f32
    t_emb, mod = timestep_fused(sin_emb.astype(jnp.bfloat16), params)
    out['timestep_embeddings'] = t_emb
    out['timestep_scale'] = mod[:, :d]
    out['timestep_shift'] = mod[:, d:]

    # dropout is identity at inference time
    return out


# ----------------------------------------------------------------------------- #
if __name__ == "__main__":
    key = jax.random.PRNGKey(0)
    pkey, k1, k2, k3, k4, k5 = jax.random.split(key, 6)

    params = fold_params(init_params(pkey))   # one-time weight folding / casts

    batch, seq_len, num_elements = 2, 8, 8
    layout_tokens = jax.random.randint(k1, (batch, seq_len), 0,
                                       ELEM_VOCAB + PROP_VOCAB, dtype=jnp.int32)
    element_ids = jax.random.randint(k2, (batch, num_elements), 0,
                                     ELEM_VOCAB, dtype=jnp.int32)
    property_ids = jax.random.randint(k3, (batch, num_elements), 0,
                                      PROP_VOCAB, dtype=jnp.int32)
    xywh = jax.random.uniform(k4, (batch, num_elements, 4), jnp.float32,
                              0.0, 999.0)
    aspect = xywh[..., 2:3] / (xywh[..., 3:4] + 1e-6)
    area = (xywh[..., 2:3] * xywh[..., 3:4]) / 1000.0
    geometric_features = jnp.concatenate([xywh, aspect, area], axis=-1)   # [B,N,6]
    timesteps = jax.random.randint(k5, (batch,), 0, 1000, dtype=jnp.int32)

    outs = layout_embedding_forward(params, layout_tokens, geometric_features,
                                    element_ids, property_ids, timesteps)
    outs = jax.block_until_ready(outs)

    assert outs['token_embeddings'].shape == (batch, seq_len, D_MODEL)
    assert outs['layout_embeddings'].shape == (batch, num_elements, D_MODEL)
    assert outs['timestep_embeddings'].shape == (batch, D_MODEL)
    assert outs['timestep_scale'].shape == (batch, D_MODEL)
    assert outs['timestep_shift'].shape == (batch, D_MODEL)
    assert bool(jnp.all(jnp.isfinite(outs['layout_embeddings'])))
    assert bool(jnp.all(jnp.isfinite(outs['token_embeddings'])))
    print("KERNEL_OK")
</pallas_src>

<mosaic_0001>
module attributes {stable_mosaic.version = 11 : i64} {
  func.func @_token_kernel(%arg0: i32, %arg1: memref<2x8x128xbf16, #tpu.memory_space<vmem>>, %arg2: memref<1x8x128xbf16, #tpu.memory_space<vmem>>, %arg3: memref<1x128xf32, #tpu.memory_space<vmem>>, %arg4: memref<1x128xf32, #tpu.memory_space<vmem>>, %arg5: memref<2x8x128xf32, #tpu.memory_space<vmem>>) attributes {dimension_semantics = [#tpu.dimension_semantics<parallel>], iteration_bounds = array<i64: 1>, scalar_prefetch = 0 : i64, scratch_operands = 0 : i64, tpu.core_type = #tpu.core_type<tc>, window_params = [{transform_indices = @transform_0, window_bounds = array<i64: 2, 8, 128>}, {pipeline_mode = #tpu.pipeline_mode<synchronous>, transform_indices = @transform_1, window_bounds = array<i64: 1, 8, 128>}, {pipeline_mode = #tpu.pipeline_mode<synchronous>, transform_indices = @transform_2, window_bounds = array<i64: 1, 128>}, {pipeline_mode = #tpu.pipeline_mode<synchronous>, transform_indices = @transform_3, window_bounds = array<i64: 1, 128>}, {transform_indices = @transform_4, window_bounds = array<i64: 2, 8, 128>}]} {
    %c0 = arith.constant 0 : index
    %c0_0 = arith.constant 0 : index
    %c0_1 = arith.constant 0 : index
    %0 = vector.load %arg1[%c0, %c0_0, %c0_1] : memref<2x8x128xbf16, #tpu.memory_space<vmem>>, vector<2x8x128xbf16>
    %1 = arith.extf %0 : vector<2x8x128xbf16> to vector<2x8x128xf32>
    %c0_2 = arith.constant 0 : index
    %c0_3 = arith.constant 0 : index
    %c0_4 = arith.constant 0 : index
    %2 = vector.load %arg2[%c0_2, %c0_3, %c0_4] : memref<1x8x128xbf16, #tpu.memory_space<vmem>>, vector<1x8x128xbf16>
    %3 = arith.extf %2 : vector<1x8x128xbf16> to vector<1x8x128xf32>
    %4 = vector.broadcast %3 : vector<1x8x128xf32> to vector<2x8x128xf32>
    %5 = arith.addf %1, %4 : vector<2x8x128xf32>
    %c0_5 = arith.constant 0 : index
    %c0_6 = arith.constant 0 : index
    %6 = vector.load %arg3[%c0_5, %c0_6] : memref<1x128xf32, #tpu.memory_space<vmem>>, vector<1x128xf32>
    %c0_7 = arith.constant 0 : index
    %c0_8 = arith.constant 0 : index
    %7 = vector.load %arg4[%c0_7, %c0_8] : memref<1x128xf32, #tpu.memory_space<vmem>>, vector<1x128xf32>
    %cst = arith.constant dense<0.000000e+00> : vector<2x8xf32>
    %8 = vector.multi_reduction <add>, %5, %cst [2] : vector<2x8x128xf32> to vector<2x8xf32>
    %9 = vector.shape_cast %8 : vector<2x8xf32> to vector<2x8x1xf32>
    %cst_9 = arith.constant 1.280000e+02 : f32
    %10 = vector.broadcast %cst_9 : f32 to vector<2x8x1xf32>
    %11 = arith.divf %9, %10 : vector<2x8x1xf32>
    %12 = vector.broadcast %11 : vector<2x8x1xf32> to vector<2x8x128xf32>
    %13 = arith.subf %5, %12 : vector<2x8x128xf32>
    %14 = arith.mulf %13, %13 : vector<2x8x128xf32>
    %cst_10 = arith.constant dense<0.000000e+00> : vector<2x8xf32>
    %15 = vector.multi_reduction <add>, %14, %cst_10 [2] : vector<2x8x128xf32> to vector<2x8xf32>
    %16 = vector.shape_cast %15 : vector<2x8xf32> to vector<2x8x1xf32>
    %cst_11 = arith.constant 1.280000e+02 : f32
    %17 = vector.broadcast %cst_11 : f32 to vector<2x8x1xf32>
    %18 = arith.divf %16, %17 : vector<2x8x1xf32>
    %19 = vector.broadcast %11 : vector<2x8x1xf32> to vector<2x8x128xf32>
    %20 = arith.subf %5, %19 : vector<2x8x128xf32>
    %cst_12 = arith.constant 9.99999974E-6 : f32
    %21 = vector.broadcast %cst_12 : f32 to vector<2x8x1xf32>
    %22 = arith.addf %18, %21 : vector<2x8x1xf32>
    %23 = math.rsqrt %22 : vector<2x8x1xf32>
    %24 = vector.broadcast %23 : vector<2x8x1xf32> to vector<2x8x128xf32>
    %25 = arith.mulf %20, %24 : vector<2x8x128xf32>
    %26 = vector.shape_cast %6 : vector<1x128xf32> to vector<1x1x128xf32>
    %27 = vector.broadcast %26 : vector<1x1x128xf32> to vector<2x8x128xf32>
    %28 = arith.mulf %25, %27 : vector<2x8x128xf32>
    %29 = vector.shape_cast %7 : vector<1x128xf32> to vector<1x1x128xf32>
    %30 = vector.broadcast %29 : vector<1x1x128xf32> to vector<2x8x128xf32>
    %31 = arith.addf %28, %30 : vector<2x8x128xf32>
    %c0_13 = arith.constant 0 : index
    %c0_14 = arith.constant 0 : index
    %c0_15 = arith.constant 0 : index
    %32 = vector.load %arg5[%c0_13, %c0_14, %c0_15] : memref<2x8x128xf32, #tpu.memory_space<vmem>>, vector<2x8x128xf32>
    tpu.vector_store %arg5[%c0_13, %c0_14, %c0_15], %31 {strides = array<i32>} : memref<2x8x128xf32, #tpu.memory_space<vmem>>, vector<2x8x128xf32>,
    return
  }
  func.func @transform_0(%arg0: i32) -> (i32, i32, i32) {
    %c0_i32 = arith.constant 0 : i32
    %c0_i32_0 = arith.constant 0 : i32
    %c0_i32_1 = arith.constant 0 : i32
    return %arg0, %c0_i32, %c0_i32_0 : i32, i32, i32
  }
  func.func @transform_1(%arg0: i32) -> (i32, i32, i32) {
    %c0_i32 = arith.constant 0 : i32
    %c0_i32_0 = arith.constant 0 : i32
    %c0_i32_1 = arith.constant 0 : i32
    %c0_i32_2 = arith.constant 0 : i32
    return %c0_i32, %c0_i32_0, %c0_i32_1 : i32, i32, i32
  }
  func.func @transform_2(%arg0: i32) -> (i32, i32) {
    %c0_i32 = arith.constant 0 : i32
    %c0_i32_0 = arith.constant 0 : i32
    %c0_i32_1 = arith.constant 0 : i32
    return %c0_i32, %c0_i32_0 : i32, i32
  }
  func.func @transform_3(%arg0: i32) -> (i32, i32) {
    %c0_i32 = arith.constant 0 : i32
    %c0_i32_0 = arith.constant 0 : i32
    %c0_i32_1 = arith.constant 0 : i32
    return %c0_i32, %c0_i32_0 : i32, i32
  }
  func.func @transform_4(%arg0: i32) -> (i32, i32, i32) {
    %c0_i32 = arith.constant 0 : i32
    %c0_i32_0 = arith.constant 0 : i32
    %c0_i32_1 = arith.constant 0 : i32
    return %arg0, %c0_i32, %c0_i32_0 : i32, i32, i32
  }
}

</mosaic_0001>

<llo_original>
// kernel: tpu_custom_call.1
$region0: #{tpu_custom_call.1}
  #allocation0 [shape = 'u32[]', space=smem, size = 0x4, offset = 0x4, fixed_abs, tag = 'smem constant byte address 0x4 - core index']
  #allocation1 [shape = 'u32[144,128]{1,0:T(1,128)}', space=vmem, size = 0x12000, scoped, tag = 'internal scratch']
  %s0 = inlined_call_operand.hbm [shape: bf16[2,8,128], index: 0, kind: input, shape index: {}]
  %s1 = inlined_call_operand.hbm [shape: bf16[1,8,128], index: 1, kind: input, shape index: {}]
  %s2 = inlined_call_operand.vmem [shape: f32[1,128], index: 2, kind: input, shape index: {}]
  %s3 = inlined_call_operand.vmem [shape: f32[1,128], index: 3, kind: input, shape index: {}]
  %s4 = inlined_call_operand.hbm [shape: f32[2,8,128], index: 4, kind: output, shape index: {}]
  %s5 = sld [smem:[#allocation0]]
  $region34: #{tpu_custom_call.1} parent=0
    _
  %s7 = ssub.s32 1, %s5
  %s8 = scalar_select 0, %s7, %s5
  $region1: #{tpu_custom_call.1} parent=0
    #allocation2 [shape = 'u8[4096]{0}', space=vmem, size = 0x1000, scoped, tag = 'input window, operand 0, single buffered']
    #allocation3 [shape = 's32[1]{0}', space=sflag, size = 0x4, scoped, tag = 'scoped memory for tpu_custom_call.1']
    #allocation4 [shape = 's32[1]{0}', space=sflag, size = 0x4, scoped, tag = 'scoped memory for tpu_custom_call.1']
    #allocation5 [shape = 'u8[2048]{0}', space=vmem, size = 0x800, scoped, tag = 'input window, operand 1, single buffered']
    #allocation6 [shape = 's32[1]{0}', space=sflag, size = 0x4, scoped, tag = 'scoped memory for tpu_custom_call.1']
    #allocation7 [shape = 'u8[8192]{0}', space=vmem, size = 0x2000, scoped, tag = 'output window, operand 0, single buffered']
    %9 = vsyncpa [#allocation3], 0
    %10 = vsyncpa [#allocation6], 0
    %11 = vsyncpa [#allocation4], 0
    // Predicated region
    $region2: #{tpu_custom_call.1} parent=1 // pred_check
      _
    $region3: #{tpu_custom_call.1} parent=1 // pred_check_branch
      %13 = sbr.rel (0) target = $region5
    $region4: #{tpu_custom_call.1} parent=1 // pred_region
      %s15 = ssub.s32 128, 128
      %16 = vsyncadd [#allocation3], %s15
      %s17 = sshll.u32 [#allocation2], 4
      %s18 = int_to_ptr.vmem [resolvable:$true] %s17
      %23 = dma.hbm_to_vmem [thread:$0]  %s0, 128, %s18, [#allocation3], 64, 64, 4
    $region5: #{tpu_custom_call.1} parent=1 // pred_fallthru
      _
    // Predicated region
    $region6: #{tpu_custom_call.1} parent=1 // pred_check
      _
    $region7: #{tpu_custom_call.1} parent=1 // pred_check_branch
      %25 = sbr.rel (0) target = $region9
    $region8: #{tpu_custom_call.1} parent=1 // pred_region
      %s27 = ssub.s32 64, 64
      %28 = vsyncadd [#allocation6], %s27
      %s30 = sshll.u32 [#allocation5], 4
      %s31 = int_to_ptr.vmem [resolvable:$true] %s30
      %33 = dma.hbm_to_vmem [thread:$0]  %s1, 64, %s31, [#allocation6]
    $region9: #{tpu_custom_call.1} parent=1 // pred_fallthru
      _
    // Predicated region
    $region10: #{tpu_custom_call.1} parent=1 // pred_check
      _
    $region11: #{tpu_custom_call.1} parent=1 // pred_check_branch
      %35 = sbr.rel (0) target = $region13
    $region12: #{tpu_custom_call.1} parent=1 // pred_region
      _
    $region13: #{tpu_custom_call.1} parent=1 // pred_fallthru
      _
    // Predicated region
    $region14: #{tpu_custom_call.1} parent=1 // pred_check
      _
    $region15: #{tpu_custom_call.1} parent=1 // pred_check_branch
      %37 = sbr.rel (0) target = $region17
    $region16: #{tpu_custom_call.1} parent=1 // pred_region
      _
    $region17: #{tpu_custom_call.1} parent=1 // pred_fallthru
      _
    // Predicated region
    $region18: #{tpu_custom_call.1} parent=1 // pred_check
      _
    $region19: #{tpu_custom_call.1} parent=1 // pred_check_branch
      %39 = sbr.rel (0) target = $region21
    $region20: #{tpu_custom_call.1} parent=1 // pred_region
      %40 = dma.done [#allocation3], 128
    $region21: #{tpu_custom_call.1} parent=1 // pred_fallthru
      _
    // Predicated region
    $region22: #{tpu_custom_call.1} parent=1 // pred_check
      _
    $region23: #{tpu_custom_call.1} parent=1 // pred_check_branch
      %42 = sbr.rel (0) target = $region25
    $region24: #{tpu_custom_call.1} parent=1 // pred_region
      %43 = dma.done [#allocation6], 64
    $region25: #{tpu_custom_call.1} parent=1 // pred_fallthru
      _
    %v44 = vld [vmem:[#allocation2] sm:$0xf]
    %v45 = vld [vmem:[#allocation2 + $0x4] sm:$0xf]
    %v46 = vunpack.c.l.bf16 %v44
    %v47 = vunpack.c.l.bf16 %v45
    %v48 = vld [vmem:[#allocation5] sm:$0xf]
    %v49 = vunpack.c.l.bf16 %v48
    %v50 = vadd.f32 %v46, %v49
    %v51 = vadd.f32 %v47, %v49
    %v52 = vld [vmem:[%s2] sm:$0x1]
    %v53 = vld [vmem:[%s3] sm:$0x1]
    %54 = vadd.xlane.f32.xlu0 %v50
    %v55 = vpop.xlane.xlu0 %54
    %56 = vadd.xlane.f32.xlu0 %v51
    %v57 = vpop.xlane.xlu0 %56
    %v58 = vrcp.pop 128.0
    %v59 = vmul.f32 %v55, %v58
    %v60 = vmul.f32 %v57, %v58
    %v61 = vsub.f32 %v50, %v59
    %v62 = vsub.f32 %v51, %v60
    %v63 = vmul.f32 %v61, %v61
    %v64 = vmul.f32 %v62, %v62
    %65 = vadd.xlane.f32.xlu0 %v63
    %v66 = vpop.xlane.xlu0 %65
    %67 = vadd.xlane.f32.xlu0 %v64
    %v68 = vpop.xlane.xlu0 %67
    %v69 = vmul.f32 %v66, %v58
    %v70 = vmul.f32 %v68, %v58
    %v71 = vadd.f32 %v69, 1e-05
    %v72 = vadd.f32 %v70, 1e-05
    %v73 = vrsqrt.pop %v71
    %v74 = vrsqrt.pop %v72
    %v75 = vmul.f32 %v61, %v73
    %v76 = vmul.f32 %v62, %v74
    %v78 = vlaneseq
    %v79 = vshrl.u32 %v78, 7
    %v80 = vsub.s32 0, %v79
    %v81 = vrot.slane %v52, %v80
    %v83 = vmul.f32 %v75, %v81
    %v84 = vmul.f32 %v76, %v81
    %v86 = vlaneseq
    %v87 = vshrl.u32 %v86, 7
    %v88 = vsub.s32 0, %v87
    %v89 = vrot.slane %v53, %v88
    %v91 = vadd.f32 %v83, %v89
    %v92 = vadd.f32 %v84, %v89
    %93 = vst [vmem:[#allocation7] sm:$0xff] %v91
    %94 = vst [vmem:[#allocation7 + $0x8] sm:$0xff] %v92
    // Predicated region
    $region26: #{tpu_custom_call.1} parent=1 // pred_check
      _
    $region27: #{tpu_custom_call.1} parent=1 // pred_check_branch
      %96 = sbr.rel (0) target = $region29
    $region28: #{tpu_custom_call.1} parent=1 // pred_region
      %s98 = ssub.s32 256, 256
      %99 = vsyncadd [#allocation4], %s98
      %s100 = sshll.u32 [#allocation7], 4
      %s101 = int_to_ptr.vmem [resolvable:$true] %s100
      %106 = dma.vmem_to_hbm [thread:$0]  %s101, 256, %s4, [#allocation4], 128, 128, 8
    $region29: #{tpu_custom_call.1} parent=1 // pred_fallthru
      _
    // Predicated region
    $region30: #{tpu_custom_call.1} parent=1 // pred_check
      _
    $region31: #{tpu_custom_call.1} parent=1 // pred_check_branch
      %108 = sbr.rel (0) target = $region33
    $region32: #{tpu_custom_call.1} parent=1 // pred_region
      %109 = dma.done [#allocation4], 256
    $region33: #{tpu_custom_call.1} parent=1 // pred_fallthru
      _
    %110 = vsyncpa [#allocation3], 1
    %111 = vsyncpa [#allocation6], 1
    %112 = vsyncpa [#allocation4], 1

</llo_original>
